<compile_context>
chip_gen: v6e
topology: v6e:2x2x1
jax: 0.10.0
libtpu: 0.0.40
codegen_flags: <defaults>
</compile_context>

<pallas_src>
import functools

import jax
import jax.numpy as jnp
import numpy as np
from jax import lax
from jax.experimental import pallas as pl
from jax.experimental.pallas import tpu as pltpu

EPS = 1e-6
NUM_GROUPS = 32


# ---------------------------------------------------------------------------
# Hardware introspection (generation-aware VMEM budgets / tile caps)
# ---------------------------------------------------------------------------
@functools.lru_cache(maxsize=1)
def _vmem_limit_bytes():
    """Per-call VMEM limit handed to Mosaic (leaves headroom for internal scratch)."""
    try:
        phys = int(pltpu.get_tpu_info().vmem_capacity_bytes)
    except Exception:
        phys = 64 * 1024 * 1024            # conservative fallback: v7x per-TC size
    return (phys * 3) // 4                 # ~48 MiB on v7x, ~96 MiB on v5e/v6e


@functools.lru_cache(maxsize=1)
def _tile_caps():
    """(tq_cap, tkv_cap) for the streaming path, per TPU generation."""
    try:
        kind = jax.devices()[0].device_kind.lower()
    except Exception:
        kind = ""
    if "v5 lite" in kind or "v5e" in kind or "v5litepod" in kind:
        # v5e roofline saturates near tq=256; bigger tiles buy nothing.
        return 256, 512
    # v6e / v7x need larger q tiles to stay MXU-bound while streaming K/V.
    return 512, 1024


@functools.lru_cache(maxsize=1)
def _supports_buffered_one():
    """Probe once whether this build accepts pipeline_mode=pl.Buffered(1)."""
    if not hasattr(pl, "Buffered"):
        return False

    def _kern(a_ref, o_ref):
        o_ref[...] = a_ref[...] + 1.0

    try:
        fn = pl.pallas_call(
            _kern,
            out_shape=jax.ShapeDtypeStruct((8, 128), jnp.float32),
            grid=(1,),
            in_specs=[pl.BlockSpec((8, 128), lambda i: (0, 0),
                                   pipeline_mode=pl.Buffered(1))],
            out_specs=pl.BlockSpec((8, 128), lambda i: (0, 0)),
        )
        jax.block_until_ready(fn(jnp.zeros((8, 128), jnp.float32)))
        return True
    except Exception:
        return False


# ---------------------------------------------------------------------------
# Tile selection (VMEM-budgeted; spatial tiles sit in the lane dim, so they
# must be multiples of 128 or the full spatial extent)
# ---------------------------------------------------------------------------
def _candidate_tiles(n, cap):
    """Divisors of n that are multiples of 128 (descending), plus n itself."""
    cands = []
    t = (min(cap, n) // 128) * 128
    while t >= 128:
        if n % t == 0:
            cands.append(t)
        t -= 128
    if n not in cands:
        cands.append(n)
    return cands


def _pass_b_vmem(tq, tkv, C, cdtb, resident, single_buf):
    kv_rep = (1 if single_buf else 2) if resident else 2
    b = kv_rep * 2 * tkv * C * cdtb                       # kT + v blocks
    b += 2 * tq * C * cdtb                                # q block (double buffered)
    b += 2 * C * tq * 4                                   # residual x block
    b += 2 * C * tq * 4                                   # output block
    b += (1 if single_buf else 2) * (C * C * cdtb + C * 4)   # Wp, bp
    if not resident:
        b += tq * C * 4 + 2 * tq * 4                      # acc / m / l scratch
    b += 3 * tq * tkv * 4                                 # s, p, p.astype temps
    return b


def _pass_a_vmem(thw, C, cdtb, single_buf):
    w_rep = 1 if single_buf else 2
    b = w_rep * (3 * C * C * cdtb + 2 * C * 4 + C * 4)    # Wqv, Wk, biases
    b += 2 * C * thw * 4                                  # x block
    b += 2 * 2 * C * 4                                    # scale + shift blocks
    b += 2 * (2 * thw * C * cdtb + C * thw * cdtb)        # q, v, kT output blocks
    b += 3 * C * thw * 4 + 2 * thw * C * 4                # xn / qv temporaries
    return b


def _select_tiles(HW, C, cdtb, B, single_buf):
    budget = int(_vmem_limit_bytes() * 0.8)
    tq_cap, _tkv_cap = _tile_caps()

    # Prefer q tiles whose 'parallel' grid extent can split across 2 TCs (v7x).
    def order(cands):
        return sorted(cands, key=lambda t: (B * (HW // t) < 2, -t))

    tq_cands = order(_candidate_tiles(HW, tq_cap))

    # 1) K/V-resident mode: single kv step, K/V DMA'd once per batch.
    for tq in tq_cands:
        if _pass_b_vmem(tq, HW, C, cdtb, True, single_buf) <= budget:
            return tq, HW, True
    # 2) streaming (flash) mode.
    for tq in tq_cands:
        for tkv in _candidate_tiles(HW, _tkv_cap):
            if _pass_b_vmem(tq, tkv, C, cdtb, False, single_buf) <= budget:
                return tq, tkv, False
    raise ValueError(
        f"AttnBlock: no spatial tiling of HW={HW}, C={C} fits the VMEM budget "
        f"({budget} bytes). The spatial extent needs a multiple-of-128 divisor "
        f"or a smaller channel count.")


def _select_pass_a_tile(HW, C, cdtb, single_buf):
    budget = int(_vmem_limit_bytes() * 0.8)
    for t in _candidate_tiles(HW, 512):
        if _pass_a_vmem(t, C, cdtb, single_buf) <= budget:
            return t
    raise ValueError(
        f"AttnBlock: no norm/QKV tiling of HW={HW}, C={C} fits the VMEM budget.")


# ---------------------------------------------------------------------------
# Pass A: GroupNorm-apply + fused q/v projection (positions-major) + k^T
# ---------------------------------------------------------------------------
def _norm_qkv_kernel(x_ref, scale_ref, shift_ref, wqv_ref, bqv_ref, wk_ref, bk_ref,
                     q_ref, v_ref, kt_ref, *, c):
    xn = x_ref[0] * scale_ref[0] + shift_ref[0]            # (C, thw) f32
    xn_c = xn.astype(wqv_ref.dtype)
    # q / v positions-major: (thw, 2C) = xn^T @ [Wq^T*sq | Wv^T]
    qv = lax.dot_general(xn_c, wqv_ref[...], (((0,), (0,)), ((), ())),
                         preferred_element_type=jnp.float32) + bqv_ref[...]
    # k stays channels-major (already transposed for pass B): (C, thw) = Wk @ xn
    kt = jnp.dot(wk_ref[...], xn_c,
                 preferred_element_type=jnp.float32) + bk_ref[...]
    odt = q_ref.dtype
    q_ref[0] = qv[:, :c].astype(odt)
    v_ref[0] = qv[:, c:].astype(odt)
    kt_ref[0] = kt.astype(odt)


# ---------------------------------------------------------------------------
# Pass B, K/V-resident: one kv step, plain (numerically-stable) softmax,
# proj_out + residual fused, output written directly in NCHW layout.
# ---------------------------------------------------------------------------
def _attn_resident_kernel(q_ref, kt_ref, v_ref, x_ref, wp_ref, bp_ref, o_ref,
                          *, approx_recip):
    s = jnp.dot(q_ref[0], kt_ref[0], preferred_element_type=jnp.float32)  # (tq, HW)
    m = jnp.max(s, axis=-1, keepdims=True)
    p = jnp.exp(s - m)
    l = jnp.sum(p, axis=-1, keepdims=True)
    h = jnp.dot(p.astype(v_ref.dtype), v_ref[0],
                preferred_element_type=jnp.float32)
    h = h * pl.reciprocal(l, approx=approx_recip)                          # (tq, C)
    # out[c, p] = sum_i Wp[c, i] * h[p, i]  -> channels-major (NCHW) directly
    proj = lax.dot_general(wp_ref[...], h.astype(wp_ref.dtype),
                           (((1,), (1,)), ((), ())),
                           preferred_element_type=jnp.float32) + bp_ref[...]
    o_ref[0] = x_ref[0] + proj


# ---------------------------------------------------------------------------
# Pass B, streaming: flash-style online softmax over kv tiles.
# ---------------------------------------------------------------------------
def _attn_stream_kernel(q_ref, kt_ref, v_ref, x_ref, wp_ref, bp_ref, o_ref,
                        m_scr, l_scr, acc_scr, *, approx_recip):
    kj = pl.program_id(2)

    @pl.when(kj == 0)
    def _init():
        m_scr[...] = jnp.full_like(m_scr, -jnp.inf)
        l_scr[...] = jnp.zeros_like(l_scr)
        acc_scr[...] = jnp.zeros_like(acc_scr)

    s = jnp.dot(q_ref[0], kt_ref[0], preferred_element_type=jnp.float32)  # (tq, tkv)
    m_prev = m_scr[...]
    m_new = jnp.maximum(m_prev, jnp.max(s, axis=-1, keepdims=True))
    alpha = jnp.exp(m_prev - m_new)
    p = jnp.exp(s - m_new)
    l_scr[...] = alpha * l_scr[...] + jnp.sum(p, axis=-1, keepdims=True)
    acc_scr[...] = alpha * acc_scr[...] + jnp.dot(
        p.astype(v_ref.dtype), v_ref[0], preferred_element_type=jnp.float32)
    m_scr[...] = m_new

    @pl.when(kj == pl.num_programs(2) - 1)
    def _finalize():
        h = acc_scr[...] * pl.reciprocal(l_scr[...], approx=approx_recip)  # (tq, C)
        proj = lax.dot_general(wp_ref[...], h.astype(wp_ref.dtype),
                               (((1,), (1,)), ((), ())),
                               preferred_element_type=jnp.float32) + bp_ref[...]
        o_ref[0] = x_ref[0] + proj                                         # NCHW tile


# ---------------------------------------------------------------------------
# Forward
# ---------------------------------------------------------------------------
def _forward(x_nchw, params, compute_dtype, tq, tkv, thw):
    B, C, H, W = x_nchw.shape
    if C % NUM_GROUPS != 0:
        raise ValueError("GroupNorm(32) requires channels divisible by 32")
    HW = H * W
    G, cs = NUM_GROUPS, C // NUM_GROUPS
    cdt = compute_dtype
    cdtb = np.dtype(cdt).itemsize
    approx_recip = np.dtype(cdt) != np.dtype(np.float32)
    single_buf = _supports_buffered_one()
    vmem_limit = _vmem_limit_bytes()

    # ---- tile selection (VMEM-budgeted, generation-aware) ----
    if tq is None and tkv is None:
        tq, tkv, resident = _select_tiles(HW, C, cdtb, B, single_buf)
    else:
        tq = HW if tq is None else tq
        tkv = HW if tkv is None else tkv
        resident = (tkv == HW)
    thw = _select_pass_a_tile(HW, C, cdtb, single_buf) if thw is None else thw
    for name, t in (("tq", tq), ("tkv", tkv), ("thw", thw)):
        if HW % t != 0 or (t != HW and t % 128 != 0):
            raise ValueError(f"{name}={t} must divide HW={HW} and be a multiple "
                             f"of 128 (or equal HW)")

    # ---- input viewed as (B, C, HW): no wrapper-side transposes at all ----
    xf = x_nchw.reshape(B, C, HW).astype(jnp.float32)

    # GroupNorm statistics: single fused XLA pass (sum + sum-of-squares).
    # TODO(synk): per-(batch,group) stats stay a tiny XLA reduction rather than
    # a dedicated Pallas stats pass (same HBM traffic either way).
    s1 = jnp.sum(xf, axis=2)                                   # (B, C)
    s2 = jnp.sum(xf * xf, axis=2)                              # (B, C)
    n = cs * HW
    mean_g = s1.reshape(B, G, cs).sum(-1) / n                  # (B, G)
    var_g = s2.reshape(B, G, cs).sum(-1) / n - mean_g * mean_g # biased (torch)
    rstd_g = lax.rsqrt(jnp.maximum(var_g, 0.0) + EPS)
    mean_c = jnp.repeat(mean_g, cs, axis=1)                    # (B, C)
    rstd_c = jnp.repeat(rstd_g, cs, axis=1)
    gamma = params["gamma"].astype(jnp.float32)[None, :]
    beta = params["beta"].astype(jnp.float32)[None, :]
    scale = (rstd_c * gamma)[:, :, None]                       # (B, C, 1)
    shift = (beta - mean_c * rstd_c * gamma)[:, :, None]       # (B, C, 1)

    # Fold softmax scale 1/sqrt(C) into Wq / bq; lay out weights for the kernels.
    sq = float(C) ** -0.5
    wqv = jnp.concatenate([params["wq"].T * sq, params["wv"].T], axis=1).astype(cdt)
    bqv = jnp.concatenate([params["bq"] * sq, params["bv"]]).reshape(1, 2 * C)
    bqv = bqv.astype(jnp.float32)
    wk_ = params["wk"].astype(cdt)                             # (Cout, Cin)
    bk_ = params["bk"].reshape(C, 1).astype(jnp.float32)
    wp_ = params["wp"].astype(cdt)                             # (Cout, Cin)
    bp_ = params["bp"].reshape(C, 1).astype(jnp.float32)

    def const_spec(shape):
        zero = (0,) * len(shape)
        if single_buf:
            return pl.BlockSpec(shape, lambda *_: zero, pipeline_mode=pl.Buffered(1))
        return pl.BlockSpec(shape, lambda *_: zero)

    # ---- pass A: GroupNorm-apply + fused q/v + k^T projections ----
    q, v, kt = pl.pallas_call(
        functools.partial(_norm_qkv_kernel, c=C),
        out_shape=(jax.ShapeDtypeStruct((B, HW, C), cdt),      # q
                   jax.ShapeDtypeStruct((B, HW, C), cdt),      # v
                   jax.ShapeDtypeStruct((B, C, HW), cdt)),     # k^T
        grid=(B, HW // thw),
        in_specs=[
            pl.BlockSpec((1, C, thw), lambda b, i: (b, 0, i)),   # x (NCHW slab)
            pl.BlockSpec((1, C, 1), lambda b, i: (b, 0, 0)),     # scale
            pl.BlockSpec((1, C, 1), lambda b, i: (b, 0, 0)),     # shift
            const_spec((C, 2 * C)),                              # [Wq^T*sq | Wv^T]
            const_spec((1, 2 * C)),                              # [bq*sq | bv]
            const_spec((C, C)),                                  # Wk
            const_spec((C, 1)),                                  # bk
        ],
        out_specs=[
            pl.BlockSpec((1, thw, C), lambda b, i: (b, i, 0)),
            pl.BlockSpec((1, thw, C), lambda b, i: (b, i, 0)),
            pl.BlockSpec((1, C, thw), lambda b, i: (b, 0, i)),
        ],
        compiler_params=pltpu.CompilerParams(
            dimension_semantics=("parallel", "parallel"),
            vmem_limit_bytes=vmem_limit),
    )(xf, scale, shift, wqv, bqv, wk_, bk_)

    # ---- pass B: attention + proj_out + residual (output directly NCHW) ----
    if resident:
        def kv_spec(shape):
            idx = lambda b, qi: (b, 0, 0)
            if single_buf:
                return pl.BlockSpec(shape, idx, pipeline_mode=pl.Buffered(1))
            return pl.BlockSpec(shape, idx)

        out = pl.pallas_call(
            functools.partial(_attn_resident_kernel, approx_recip=approx_recip),
            out_shape=jax.ShapeDtypeStruct((B, C, HW), jnp.float32),
            grid=(B, HW // tq),
            in_specs=[
                pl.BlockSpec((1, tq, C), lambda b, qi: (b, qi, 0)),   # q
                kv_spec((1, C, HW)),                                  # k^T (resident)
                kv_spec((1, HW, C)),                                  # v  (resident)
                pl.BlockSpec((1, C, tq), lambda b, qi: (b, 0, qi)),   # residual x
                const_spec((C, C)),                                   # Wp
                const_spec((C, 1)),                                   # bp
            ],
            out_specs=pl.BlockSpec((1, C, tq), lambda b, qi: (b, 0, qi)),
            compiler_params=pltpu.CompilerParams(
                dimension_semantics=("parallel", "parallel"),
                vmem_limit_bytes=vmem_limit),
        )(q, kt, v, xf, wp_, bp_)
    else:
        out = pl.pallas_call(
            functools.partial(_attn_stream_kernel, approx_recip=approx_recip),
            out_shape=jax.ShapeDtypeStruct((B, C, HW), jnp.float32),
            grid=(B, HW // tq, HW // tkv),
            in_specs=[
                pl.BlockSpec((1, tq, C), lambda b, qi, kj: (b, qi, 0)),   # q
                pl.BlockSpec((1, C, tkv), lambda b, qi, kj: (b, 0, kj)),  # k^T
                pl.BlockSpec((1, tkv, C), lambda b, qi, kj: (b, kj, 0)),  # v
                pl.BlockSpec((1, C, tq), lambda b, qi, kj: (b, 0, qi)),   # residual x
                const_spec((C, C)),                                       # Wp
                const_spec((C, 1)),                                       # bp
            ],
            out_specs=pl.BlockSpec((1, C, tq), lambda b, qi, kj: (b, 0, qi)),
            scratch_shapes=[
                pltpu.VMEM((tq, 1), jnp.float32),    # running max
                pltpu.VMEM((tq, 1), jnp.float32),    # running denominator
                pltpu.VMEM((tq, C), jnp.float32),    # unnormalized accumulator
            ],
            compiler_params=pltpu.CompilerParams(
                dimension_semantics=("parallel", "parallel", "arbitrary"),
                vmem_limit_bytes=vmem_limit),
        )(q, kt, v, xf, wp_, bp_)

    return out.reshape(B, C, H, W).astype(x_nchw.dtype)


def attn_block(x_nchw, params, compute_dtype=jnp.bfloat16, tq=None, tkv=None, thw=None):
    return _forward(x_nchw, params, compute_dtype, tq, tkv, thw)


# ---------------------------------------------------------------------------
# Plain-JAX reference mirroring the PyTorch forward exactly (for validation)
# ---------------------------------------------------------------------------
def reference_attn_block(x, params):
    B, C, H, W = x.shape
    G = NUM_GROUPS
    cs = C // G
    xg = x.reshape(B, G, cs, H, W)
    mean = xg.mean(axis=(2, 3, 4), keepdims=True)
    var = xg.var(axis=(2, 3, 4), keepdims=True)
    xn = ((xg - mean) / jnp.sqrt(var + EPS)).reshape(B, C, H, W)
    xn = xn * params["gamma"][None, :, None, None] + params["beta"][None, :, None, None]

    def conv1x1(h, w, b_):
        return jnp.einsum("bchw,oc->bohw", h, w) + b_[None, :, None, None]

    q = conv1x1(xn, params["wq"], params["bq"])
    k = conv1x1(xn, params["wk"], params["bk"])
    v = conv1x1(xn, params["wv"], params["bv"])
    HW = H * W
    q = q.reshape(B, C, HW).transpose(0, 2, 1)
    k = k.reshape(B, C, HW)
    w_ = jnp.einsum("bic,bcj->bij", q, k) * (float(C) ** -0.5)
    w_ = jax.nn.softmax(w_, axis=2)
    v = v.reshape(B, C, HW)
    h_ = jnp.einsum("bcj,bij->bci", v, w_)
    h_ = h_.reshape(B, C, H, W)
    h_ = conv1x1(h_, params["wp"], params["bp"])
    return x + h_


def make_params(key, C):
    ks = jax.random.split(key, 8)
    return {
        "gamma": jnp.ones((C,), jnp.float32),
        "beta": jnp.zeros((C,), jnp.float32),
        "wq": 0.1 * jax.random.normal(ks[0], (C, C), jnp.float32),
        "bq": 0.1 * jax.random.normal(ks[1], (C,), jnp.float32),
        "wk": 0.1 * jax.random.normal(ks[2], (C, C), jnp.float32),
        "bk": 0.1 * jax.random.normal(ks[3], (C,), jnp.float32),
        "wv": 0.1 * jax.random.normal(ks[4], (C, C), jnp.float32),
        "bv": 0.1 * jax.random.normal(ks[5], (C,), jnp.float32),
        "wp": 0.1 * jax.random.normal(ks[6], (C, C), jnp.float32),
        "bp": 0.1 * jax.random.normal(ks[7], (C,), jnp.float32),
    }


if __name__ == "__main__":
    key = jax.random.PRNGKey(0)
    kx, kp = jax.random.split(key)

    # GroupNorm(32) => channels must be a multiple of 32.
    B, C, H, W = 2, 64, 8, 8
    x = jax.random.normal(kx, (B, C, H, W), jnp.float32)
    params = make_params(kp, C)
    ref = reference_attn_block(x, params)

    # K/V-resident path (HW=64 fits easily), exact f32 MXU operands.
    out_f32 = jax.block_until_ready(attn_block(x, params, compute_dtype=jnp.float32))
    np.testing.assert_allclose(np.asarray(out_f32), np.asarray(ref),
                               rtol=2e-4, atol=5e-4)

    # Default fast path (bf16 MXU operands, f32 accumulation).
    out_bf16 = jax.block_until_ready(attn_block(x, params))
    np.testing.assert_allclose(np.asarray(out_bf16), np.asarray(ref),
                               rtol=5e-2, atol=5e-2)

    # Streaming (online-softmax) path: force 128-wide tiles over HW=256 so the
    # flash accumulation across multiple q- and kv-tiles is exercised.
    B2, C2, H2, W2 = 2, 64, 16, 16
    x2 = jax.random.normal(jax.random.PRNGKey(1), (B2, C2, H2, W2), jnp.float32)
    params2 = make_params(jax.random.PRNGKey(2), C2)
    ref2 = reference_attn_block(x2, params2)
    out2 = jax.block_until_ready(
        attn_block(x2, params2, compute_dtype=jnp.float32, tq=128, tkv=128, thw=128))
    np.testing.assert_allclose(np.asarray(out2), np.asarray(ref2),
                               rtol=5e-4, atol=1e-3)

    print("KERNEL_OK")
</pallas_src>

<mosaic_0001>
module attributes {stable_mosaic.version = 11 : i64} {
  func.func @_kern(%arg0: i32, %arg1: memref<8x128xf32, #tpu.memory_space<vmem>>, %arg2: memref<8x128xf32, #tpu.memory_space<vmem>>) attributes {dimension_semantics = [#tpu.dimension_semantics<arbitrary>], iteration_bounds = array<i64: 1>, scalar_prefetch = 0 : i64, scratch_operands = 0 : i64, tpu.core_type = #tpu.core_type<tc>, window_params = [{pipeline_mode = #tpu.pipeline_mode<synchronous>, transform_indices = @transform_0, window_bounds = array<i64: 8, 128>}, {pipeline_mode = #tpu.pipeline_mode<synchronous>, transform_indices = @transform_1, window_bounds = array<i64: 8, 128>}]} {
    %c0 = arith.constant 0 : index
    %c0_0 = arith.constant 0 : index
    %0 = vector.load %arg1[%c0, %c0_0] : memref<8x128xf32, #tpu.memory_space<vmem>>, vector<8x128xf32>
    %cst = arith.constant 1.000000e+00 : f32
    %1 = vector.broadcast %cst : f32 to vector<8x128xf32>
    %2 = arith.addf %0, %1 : vector<8x128xf32>
    %c0_1 = arith.constant 0 : index
    %c0_2 = arith.constant 0 : index
    %3 = vector.load %arg2[%c0_1, %c0_2] : memref<8x128xf32, #tpu.memory_space<vmem>>, vector<8x128xf32>
    tpu.vector_store %arg2[%c0_1, %c0_2], %2 {strides = array<i32>} : memref<8x128xf32, #tpu.memory_space<vmem>>, vector<8x128xf32>,
    return
  }
  func.func @transform_0(%arg0: i32) -> (i32, i32) {
    %c0_i32 = arith.constant 0 : i32
    %c0_i32_0 = arith.constant 0 : i32
    %c0_i32_1 = arith.constant 0 : i32
    return %c0_i32, %c0_i32_0 : i32, i32
  }
  func.func @transform_1(%arg0: i32) -> (i32, i32) {
    %c0_i32 = arith.constant 0 : i32
    %c0_i32_0 = arith.constant 0 : i32
    %c0_i32_1 = arith.constant 0 : i32
    return %c0_i32, %c0_i32_0 : i32, i32
  }
}

module attributes {stable_mosaic.version = 11 : i64} {
  func.func @_norm_qkv_kernel(%arg0: i32, %arg1: i32, %arg2: memref<1x64x64xf32, #tpu.memory_space<vmem>>, %arg3: memref<1x64x1xf32, #tpu.memory_space<vmem>>, %arg4: memref<1x64x1xf32, #tpu.memory_space<vmem>>, %arg5: memref<64x128xf32, #tpu.memory_space<vmem>>, %arg6: memref<1x128xf32, #tpu.memory_space<vmem>>, %arg7: memref<64x64xf32, #tpu.memory_space<vmem>>, %arg8: memref<64x1xf32, #tpu.memory_space<vmem>>, %arg9: memref<1x64x64xf32, #tpu.memory_space<vmem>>, %arg10: memref<1x64x64xf32, #tpu.memory_space<vmem>>, %arg11: memref<1x64x64xf32, #tpu.memory_space<vmem>>) attributes {dimension_semantics = [#tpu.dimension_semantics<parallel>, #tpu.dimension_semantics<parallel>], iteration_bounds = array<i64: 2, 1>, scalar_prefetch = 0 : i64, scratch_operands = 0 : i64, tpu.core_type = #tpu.core_type<tc>, window_params = [{transform_indices = @transform_0, window_bounds = array<i64: 1, 64, 64>}, {transform_indices = @transform_1, window_bounds = array<i64: 1, 64, 1>}, {transform_indices = @transform_2, window_bounds = array<i64: 1, 64, 1>}, {pipeline_mode = #tpu.pipeline_mode<synchronous>, transform_indices = @transform_3, window_bounds = array<i64: 64, 128>}, {pipeline_mode = #tpu.pipeline_mode<synchronous>, transform_indices = @transform_4, window_bounds = array<i64: 1, 128>}, {pipeline_mode = #tpu.pipeline_mode<synchronous>, transform_indices = @transform_5, window_bounds = array<i64: 64, 64>}, {pipeline_mode = #tpu.pipeline_mode<synchronous>, transform_indices = @transform_6, window_bounds = array<i64: 64, 1>}, {transform_indices = @transform_7, window_bounds = array<i64: 1, 64, 64>}, {transform_indices = @transform_8, window_bounds = array<i64: 1, 64, 64>}, {transform_indices = @transform_9, window_bounds = array<i64: 1, 64, 64>}]} {
    %c0 = arith.constant 0 : index
    %c0_0 = arith.constant 0 : index
    %c0_1 = arith.constant 0 : index
    %0 = vector.load %arg2[%c0, %c0_0, %c0_1] : memref<1x64x64xf32, #tpu.memory_space<vmem>>, vector<1x64x64xf32>
    %1 = vector.shape_cast %0 : vector<1x64x64xf32> to vector<64x64xf32>
    %c0_2 = arith.constant 0 : index
    %c0_3 = arith.constant 0 : index
    %c0_4 = arith.constant 0 : index
    %2 = vector.load %arg3[%c0_2, %c0_3, %c0_4] : memref<1x64x1xf32, #tpu.memory_space<vmem>>, vector<1x64x1xf32>
    %3 = vector.shape_cast %2 : vector<1x64x1xf32> to vector<64x1xf32>
    %4 = vector.broadcast %3 : vector<64x1xf32> to vector<64x64xf32>
    %5 = arith.mulf %1, %4 : vector<64x64xf32>
    %c0_5 = arith.constant 0 : index
    %c0_6 = arith.constant 0 : index
    %c0_7 = arith.constant 0 : index
    %6 = vector.load %arg4[%c0_5, %c0_6, %c0_7] : memref<1x64x1xf32, #tpu.memory_space<vmem>>, vector<1x64x1xf32>
    %7 = vector.shape_cast %6 : vector<1x64x1xf32> to vector<64x1xf32>
    %8 = vector.broadcast %7 : vector<64x1xf32> to vector<64x64xf32>
    %9 = arith.addf %5, %8 : vector<64x64xf32>
    %c0_8 = arith.constant 0 : index
    %c0_9 = arith.constant 0 : index
    %10 = vector.load %arg5[%c0_8, %c0_9] : memref<64x128xf32, #tpu.memory_space<vmem>>, vector<64x128xf32>
    %cst = arith.constant dense<0.000000e+00> : vector<64x128xf32>
    %11 = tpu.matmul %9, %10, %cst {dimension_numbers = #tpu.dot_dimension_numbers<[0], [0], [1], [1], [0, 1, 1, 1], [], []>} : vector<64x64xf32>, vector<64x128xf32>, vector<64x128xf32> -> vector<64x128xf32>
    %c0_10 = arith.constant 0 : index
    %c0_11 = arith.constant 0 : index
    %12 = vector.load %arg6[%c0_10, %c0_11] : memref<1x128xf32, #tpu.memory_space<vmem>>, vector<1x128xf32>
    %13 = vector.broadcast %12 : vector<1x128xf32> to vector<64x128xf32>
    %14 = arith.addf %11, %13 : vector<64x128xf32>
    %c0_12 = arith.constant 0 : index
    %c0_13 = arith.constant 0 : index
    %15 = vector.load %arg7[%c0_12, %c0_13] : memref<64x64xf32, #tpu.memory_space<vmem>>, vector<64x64xf32>
    %cst_14 = arith.constant dense<0.000000e+00> : vector<64x64xf32>
    %16 = tpu.matmul %15, %9, %cst_14 {dimension_numbers = #tpu.dot_dimension_numbers<[1], [0], [0], [1], [0, 0, 1, 1], [], []>} : vector<64x64xf32>, vector<64x64xf32>, vector<64x64xf32> -> vector<64x64xf32>
    %c0_15 = arith.constant 0 : index
    %c0_16 = arith.constant 0 : index
    %17 = vector.load %arg8[%c0_15, %c0_16] : memref<64x1xf32, #tpu.memory_space<vmem>>, vector<64x1xf32>
    %18 = vector.broadcast %17 : vector<64x1xf32> to vector<64x64xf32>
    %19 = arith.addf %16, %18 : vector<64x64xf32>
    %20 = vector.extract_strided_slice %14 {offsets = [0, 0], sizes = [64, 64], strides = [1, 1]} : vector<64x128xf32> to vector<64x64xf32>
    %c0_17 = arith.constant 0 : index
    %c0_18 = arith.constant 0 : index
    %c0_19 = arith.constant 0 : index
    %21 = vector.load %arg9[%c0_17, %c0_18, %c0_19] : memref<1x64x64xf32, #tpu.memory_space<vmem>>, vector<1x64x64xf32>
    %22 = vector.shape_cast %21 : vector<1x64x64xf32> to vector<64x64xf32>
    %23 = vector.shape_cast %20 : vector<64x64xf32> to vector<1x64x64xf32>
    tpu.vector_store %arg9[%c0_17, %c0_18, %c0_19], %23 {strides = array<i32>} : memref<1x64x64xf32, #tpu.memory_space<vmem>>, vector<1x64x64xf32>,
    %24 = vector.extract_strided_slice %14 {offsets = [0, 64], sizes = [64, 64], strides = [1, 1]} : vector<64x128xf32> to vector<64x64xf32>
    %c0_20 = arith.constant 0 : index
    %c0_21 = arith.constant 0 : index
    %c0_22 = arith.constant 0 : index
    %25 = vector.load %arg10[%c0_20, %c0_21, %c0_22] : memref<1x64x64xf32, #tpu.memory_space<vmem>>, vector<1x64x64xf32>
    %26 = vector.shape_cast %25 : vector<1x64x64xf32> to vector<64x64xf32>
    %27 = vector.shape_cast %24 : vector<64x64xf32> to vector<1x64x64xf32>
    tpu.vector_store %arg10[%c0_20, %c0_21, %c0_22], %27 {strides = array<i32>} : memref<1x64x64xf32, #tpu.memory_space<vmem>>, vector<1x64x64xf32>,
    %c0_23 = arith.constant 0 : index
    %c0_24 = arith.constant 0 : index
    %c0_25 = arith.constant 0 : index
    %28 = vector.load %arg11[%c0_23, %c0_24, %c0_25] : memref<1x64x64xf32, #tpu.memory_space<vmem>>, vector<1x64x64xf32>
    %29 = vector.shape_cast %28 : vector<1x64x64xf32> to vector<64x64xf32>
    %30 = vector.shape_cast %19 : vector<64x64xf32> to vector<1x64x64xf32>
    tpu.vector_store %arg11[%c0_23, %c0_24, %c0_25], %30 {strides = array<i32>} : memref<1x64x64xf32, #tpu.memory_space<vmem>>, vector<1x64x64xf32>,
    return
  }
  func.func @transform_0(%arg0: i32, %arg1: i32) -> (i32, i32, i32) {
    %c0_i32 = arith.constant 0 : i32
    %c0_i32_0 = arith.constant 0 : i32
    return %arg0, %c0_i32, %arg1 : i32, i32, i32
  }
  func.func @transform_1(%arg0: i32, %arg1: i32) -> (i32, i32, i32) {
    %c0_i32 = arith.constant 0 : i32
    %c0_i32_0 = arith.constant 0 : i32
    %c0_i32_1 = arith.constant 0 : i32
    return %arg0, %c0_i32, %c0_i32_0 : i32, i32, i32
  }
  func.func @transform_2(%arg0: i32, %arg1: i32) -> (i32, i32, i32) {
    %c0_i32 = arith.constant 0 : i32
    %c0_i32_0 = arith.constant 0 : i32
    %c0_i32_1 = arith.constant 0 : i32
    return %arg0, %c0_i32, %c0_i32_0 : i32, i32, i32
  }
  func.func @transform_3(%arg0: i32, %arg1: i32) -> (i32, i32) {
    %c0_i32 = arith.constant 0 : i32
    %c0_i32_0 = arith.constant 0 : i32
    %c0_i32_1 = arith.constant 0 : i32
    return %c0_i32, %c0_i32_0 : i32, i32
  }
  func.func @transform_4(%arg0: i32, %arg1: i32) -> (i32, i32) {
    %c0_i32 = arith.constant 0 : i32
    %c0_i32_0 = arith.constant 0 : i32
    %c0_i32_1 = arith.constant 0 : i32
    return %c0_i32, %c0_i32_0 : i32, i32
  }
  func.func @transform_5(%arg0: i32, %arg1: i32) -> (i32, i32) {
    %c0_i32 = arith.constant 0 : i32
    %c0_i32_0 = arith.constant 0 : i32
    %c0_i32_1 = arith.constant 0 : i32
    return %c0_i32, %c0_i32_0 : i32, i32
  }
  func.func @transform_6(%arg0: i32, %arg1: i32) -> (i32, i32) {
    %c0_i32 = arith.constant 0 : i32
    %c0_i32_0 = arith.constant 0 : i32
    %c0_i32_1 = arith.constant 0 : i32
    return %c0_i32, %c0_i32_0 : i32, i32
  }
  func.func @transform_7(%arg0: i32, %arg1: i32) -> (i32, i32, i32) {
    %c0_i32 = arith.constant 0 : i32
    %c0_i32_0 = arith.constant 0 : i32
    return %arg0, %arg1, %c0_i32 : i32, i32, i32
  }
  func.func @transform_8(%arg0: i32, %arg1: i32) -> (i32, i32, i32) {
    %c0_i32 = arith.constant 0 : i32
    %c0_i32_0 = arith.constant 0 : i32
    return %arg0, %arg1, %c0_i32 : i32, i32, i32
  }
  func.func @transform_9(%arg0: i32, %arg1: i32) -> (i32, i32, i32) {
    %c0_i32 = arith.constant 0 : i32
    %c0_i32_0 = arith.constant 0 : i32
    return %arg0, %c0_i32, %arg1 : i32, i32, i32
  }
}

</mosaic_0001>

<llo_original>
// kernel: tpu_custom_call.1
$region0: #{tpu_custom_call.1}
  #allocation0 [shape = 'u32[]', space=smem, size = 0x4, offset = 0x4, fixed_abs, tag = 'smem constant byte address 0x4 - core index']
  #allocation1 [shape = 'u32[144,128]{1,0:T(1,128)}', space=vmem, size = 0x12000, scoped, tag = 'internal scratch']
  %s0 = inlined_call_operand.hbm [shape: f32[8,128], index: 0, kind: input, shape index: {}]
  %s1 = inlined_call_operand.hbm [shape: f32[8,128], index: 1, kind: output, shape index: {}]
  %s2 = sld [smem:[#allocation0]]
  $region18: #{tpu_custom_call.1} parent=0
    _
  %s4 = ssub.s32 1, %s2
  %s5 = scalar_select 0, %s4, %s2
  $region1: #{tpu_custom_call.1} parent=0
    #allocation2 [shape = 'u8[4096]{0}', space=vmem, size = 0x1000, scoped, tag = 'input window, operand 0, single buffered']
    #allocation3 [shape = 's32[1]{0}', space=sflag, size = 0x4, scoped, tag = 'scoped memory for tpu_custom_call.1']
    #allocation4 [shape = 's32[1]{0}', space=sflag, size = 0x4, scoped, tag = 'scoped memory for tpu_custom_call.1']
    #allocation5 [shape = 'u8[4096]{0}', space=vmem, size = 0x1000, scoped, tag = 'output window, operand 0, single buffered']
    %6 = vsyncpa [#allocation3], 0
    %7 = vsyncpa [#allocation4], 0
    // Predicated region
    $region2: #{tpu_custom_call.1} parent=1 // pred_check
      _
    $region3: #{tpu_custom_call.1} parent=1 // pred_check_branch
      %9 = sbr.rel (0) target = $region5
    $region4: #{tpu_custom_call.1} parent=1 // pred_region
      %s11 = ssub.s32 128, 128
      %12 = vsyncadd [#allocation3], %s11
      %s14 = sshll.u32 [#allocation2], 4
      %s15 = int_to_ptr.vmem [resolvable:$true] %s14
      %17 = dma.hbm_to_vmem [thread:$0]  %s0, 128, %s15, [#allocation3]
    $region5: #{tpu_custom_call.1} parent=1 // pred_fallthru
      _
    // Predicated region
    $region6: #{tpu_custom_call.1} parent=1 // pred_check
      _
    $region7: #{tpu_custom_call.1} parent=1 // pred_check_branch
      %19 = sbr.rel (0) target = $region9
    $region8: #{tpu_custom_call.1} parent=1 // pred_region
      %20 = dma.done [#allocation3], 128
    $region9: #{tpu_custom_call.1} parent=1 // pred_fallthru
      _
    %v21 = vld [vmem:[#allocation2] sm:$0xff]
    %v22 = vadd.f32 %v21, 1.0
    %23 = vst [vmem:[#allocation5] sm:$0xff] %v22
    // Predicated region
    $region10: #{tpu_custom_call.1} parent=1 // pred_check
      _
    $region11: #{tpu_custom_call.1} parent=1 // pred_check_branch
      %25 = sbr.rel (0) target = $region13
    $region12: #{tpu_custom_call.1} parent=1 // pred_region
      %s27 = ssub.s32 128, 128
      %28 = vsyncadd [#allocation4], %s27
      %s30 = sshll.u32 [#allocation5], 4
      %s31 = int_to_ptr.vmem [resolvable:$true] %s30
      %33 = dma.vmem_to_hbm [thread:$0]  %s31, 128, %s1, [#allocation4]
    $region13: #{tpu_custom_call.1} parent=1 // pred_fallthru
      _
    // Predicated region
    $region14: #{tpu_custom_call.1} parent=1 // pred_check
      _
    $region15: #{tpu_custom_call.1} parent=1 // pred_check_branch
      %35 = sbr.rel (0) target = $region17
    $region16: #{tpu_custom_call.1} parent=1 // pred_region
      %36 = dma.done [#allocation4], 128
    $region17: #{tpu_custom_call.1} parent=1 // pred_fallthru
      _
    %37 = vsyncpa [#allocation3], 1
    %38 = vsyncpa [#allocation4], 1

// kernel: tpu_custom_call.1
$region0: #{tpu_custom_call.1}
  #allocation0 [shape = 'u32[]', space=smem, size = 0x4, offset = 0x4, fixed_abs, tag = 'smem constant byte address 0x4 - core index']
  #allocation1 [shape = 'u32[144,128]{1,0:T(1,128)}', space=vmem, size = 0x12000, scoped, tag = 'internal scratch']
  %s0 = inlined_call_operand.vmem [shape: f32[2,64,64], index: 0, kind: input, shape index: {}]
  %s1 = inlined_call_operand.vmem [shape: f32[2,64,1], index: 1, kind: input, shape index: {}]
  %s2 = inlined_call_operand.vmem [shape: f32[2,64,1], index: 2, kind: input, shape index: {}]
  %s3 = inlined_call_operand.vmem [shape: f32[64,128], index: 3, kind: input, shape index: {}]
  %s4 = inlined_call_operand.vmem [shape: f32[1,128], index: 4, kind: input, shape index: {}]
  %s5 = inlined_call_operand.vmem [shape: f32[64,64], index: 5, kind: input, shape index: {}]
  %s6 = inlined_call_operand.vmem [shape: f32[64,1], index: 6, kind: input, shape index: {}]
  %s7 = inlined_call_operand.hbm [shape: f32[2,64,64], index: 7, kind: output, shape index: {0}]
  %s8 = inlined_call_operand.hbm [shape: f32[2,64,64], index: 8, kind: output, shape index: {1}]
  %s9 = inlined_call_operand.hbm [shape: f32[2,64,64], index: 9, kind: output, shape index: {2}]
  %10 = xla_tuple %s7, %s8, %s9
  %s11 = sld [smem:[#allocation0]]
  $region77: #{tpu_custom_call.1} parent=0
    _
  %s13 = ssub.s32 1, %s11
  %s14 = scalar_select 0, %s13, %s11
  $region1: #{tpu_custom_call.1} parent=0
    #allocation2 [shape = 'u8[65536]{0}', space=vmem, size = 0x10000, scoped, tag = 'output window, operand 0']
    #allocation3 [shape = 's32[2]{0}', space=sflag, size = 0x8, scoped, tag = 'scoped memory for tpu_custom_call.1']
    #allocation4 [shape = 'u8[65536]{0}', space=vmem, size = 0x10000, scoped, tag = 'output window, operand 1']
    #allocation5 [shape = 's32[2]{0}', space=sflag, size = 0x8, scoped, tag = 'scoped memory for tpu_custom_call.1']
    #allocation6 [shape = 'u8[65536]{0}', space=vmem, size = 0x10000, scoped, tag = 'output window, operand 2']
    %15 = vsyncpa [#allocation3], 0
    %s16 = scalar_lea.sflag [#allocation3], 1
    %17 = vsyncpa %s16, 0
    %18 = vsyncpa [#allocation5], 0
    %s19 = scalar_lea.sflag [#allocation5], 1
    %20 = vsyncpa %s19, 0
    loop: start=0, step=1, limit=4
    $region2: #{tpu_custom_call.1} parent=1 // loop_pre_header
      _
    $region3: #{tpu_custom_call.1} parent=1 // loop_header
      %s22 = sphi 0, %s26
      %p23 = scmp.ge.s32.totalorder %s22, 4
      %s29 = sphi 0, %s41
      %s30 = sphi 0, %s37
      %s31 = sphi 0, %s29
      %s32 = sphi 0, %s30
      %s33 = sphi 0, %s31
      %s34 = sphi 0, %s32
      %s46 = sphi 0, %s48
      %s49 = sphi 0, %s46
      %s50 = sphi 0, %s49
      %s66 = sphi 0, %s50
      %s72 = sphi 0, %s74
      %s75 = sphi 0, %s72
      %s76 = sphi 0, %s75
      %s92 = sphi 0, %s76
      %s98 = sphi 0, %s100
      %s101 = sphi 0, %s98
      %s102 = sphi 0, %s101
      %s118 = sphi 0, %s102
      %s122 = sphi 0, %s122
      %s124 = sphi 0, %s122
      %s125 = sphi 0, %s124
      %s139 = sphi 0, %s125
      %s143 = sphi 0, %s143
      %s145 = sphi 0, %s143
      %s146 = sphi 0, %s145
      %s160 = sphi 0, %s146
      %s164 = sphi 0, %s164
      %s166 = sphi 0, %s164
      %s167 = sphi 0, %s166
      %s181 = sphi 0, %s167
      %s185 = sphi 0, %s185
      %s187 = sphi 0, %s185
      %s188 = sphi 0, %s187
      %s202 = sphi 0, %s188
      %s210 = sphi 0, %s212
      %s213 = sphi 0, %s210
      %s214 = sphi 0, %s213
      %s230 = sphi 0, %s214
      %s238 = sphi 0, %s240
      %s241 = sphi 0, %s238
      %s242 = sphi 0, %s241
      %s258 = sphi 0, %s242
      %s266 = sphi 0, %s268
      %s269 = sphi 0, %s266
      %s270 = sphi 0, %s269
      %s286 = sphi 0, %s270
    $region4: #{tpu_custom_call.1} parent=1 // loop_header_branch
      %25 = sbr.rel (%p23) target = $region8
    $region5: #{tpu_custom_call.1} parent=1 // loop_body
      %s27 = ssub.s32 %s22, 1
      %s28 = ssub.s32 %s22, 2
      %s35 = sadd.s32 1, %s30
      %p36 = scmp.ge.s32.totalorder %s35, 1
      %s37 = scalar_select %p36, 0, %s35
      %s38 = sadd.s32 1, %s29
      %s39 = scalar_select %p36, %s38, %s29
      %p40 = scmp.ge.s32.totalorder %s39, 2
      %s41 = scalar_select %p40, 0, %s39
      %s42 = ssub.s32 %s29, %s41
      %s43 = ssub.s32 %s30, %s37
      %s44 = sor.u32 %s42, %s43
      %p45 = scmp.eq.s32.totalorder %s44, 0
      %s47 = sadd.s32 %s46, 1
      %s48 = scalar_select %p45, %s46, %s47
      %p51 = pneg %p45
      %p52 = scmp.eq.s32.totalorder %s22, 1
      %p53 = por %p51, %p52
      %p54 = scmp.ne.s32.totalorder %s46, %s49
      %p55 = scmp.eq.s32.totalorder %s22, 0
      %p56 = por %p54, %p55
      %p57 = scmp.ne.s32.totalorder %s46, %s49
      %p58 = scmp.eq.s32.totalorder %s27, 1
      %p59 = por %p57, %p58
      %p60 = scmp.ne.s32.totalorder %s49, %s50
      %p61 = scmp.eq.s32.totalorder %s27, 0
      %p62 = por %p60, %p61
      %p63 = scmp.ne.s32.totalorder %s49, %s50
      %p64 = scmp.eq.s32.totalorder %s28, 1
      %p65 = por %p63, %p64
      %p67 = scmp.ne.s32.totalorder %s50, %s66
      %p68 = scmp.eq.s32.totalorder %s28, 0
      %p69 = por %p67, %p68
      %s70 = ssub.s32 %s29, %s41
      %p71 = scmp.eq.s32.totalorder %s70, 0
      %s73 = sadd.s32 %s72, 1
      %s74 = scalar_select %p71, %s72, %s73
      %p77 = pneg %p71
      %p78 = scmp.eq.s32.totalorder %s22, 1
      %p79 = por %p77, %p78
      %p80 = scmp.ne.s32.totalorder %s72, %s75
      %p81 = scmp.eq.s32.totalorder %s22, 0
      %p82 = por %p80, %p81
      %p83 = scmp.ne.s32.totalorder %s72, %s75
      %p84 = scmp.eq.s32.totalorder %s27, 1
      %p85 = por %p83, %p84
      %p86 = scmp.ne.s32.totalorder %s75, %s76
      %p87 = scmp.eq.s32.totalorder %s27, 0
      %p88 = por %p86, %p87
      %p89 = scmp.ne.s32.totalorder %s75, %s76
      %p90 = scmp.eq.s32.totalorder %s28, 1
      %p91 = por %p89, %p90
      %p93 = scmp.ne.s32.totalorder %s76, %s92
      %p94 = scmp.eq.s32.totalorder %s28, 0
      %p95 = por %p93, %p94
      %s96 = ssub.s32 %s29, %s41
      %p97 = scmp.eq.s32.totalorder %s96, 0
      %s99 = sadd.s32 %s98, 1
      %s100 = scalar_select %p97, %s98, %s99
      %p103 = pneg %p97
      %p104 = scmp.eq.s32.totalorder %s22, 1
      %p105 = por %p103, %p104
      %p106 = scmp.ne.s32.totalorder %s98, %s101
      %p107 = scmp.eq.s32.totalorder %s22, 0
      %p108 = por %p106, %p107
      %p109 = scmp.ne.s32.totalorder %s98, %s101
      %p110 = scmp.eq.s32.totalorder %s27, 1
      %p111 = por %p109, %p110
      %p112 = scmp.ne.s32.totalorder %s101, %s102
      %p113 = scmp.eq.s32.totalorder %s27, 0
      %p114 = por %p112, %p113
      %p115 = scmp.ne.s32.totalorder %s101, %s102
      %p116 = scmp.eq.s32.totalorder %s28, 1
      %p117 = por %p115, %p116
      %p119 = scmp.ne.s32.totalorder %s102, %s118
      %p120 = scmp.eq.s32.totalorder %s28, 0
      %p121 = por %p119, %p120
      %s123 = sadd.s32 %s122, 1
      %p126 = scmp.eq.s32.totalorder %s22, 1
      %p127 = scmp.ne.s32.totalorder %s122, %s124
      %p128 = scmp.eq.s32.totalorder %s22, 0
      %p129 = por %p127, %p128
      %p130 = scmp.ne.s32.totalorder %s122, %s124
      %p131 = scmp.eq.s32.totalorder %s27, 1
      %p132 = por %p130, %p131
      %p133 = scmp.ne.s32.totalorder %s124, %s125
      %p134 = scmp.eq.s32.totalorder %s27, 0
      %p135 = por %p133, %p134
      %p136 = scmp.ne.s32.totalorder %s124, %s125
      %p137 = scmp.eq.s32.totalorder %s28, 1
      %p138 = por %p136, %p137
      %p140 = scmp.ne.s32.totalorder %s125, %s139
      %p141 = scmp.eq.s32.totalorder %s28, 0
      %p142 = por %p140, %p141
      %s144 = sadd.s32 %s143, 1
      %p147 = scmp.eq.s32.totalorder %s22, 1
      %p148 = scmp.ne.s32.totalorder %s143, %s145
      %p149 = scmp.eq.s32.totalorder %s22, 0
      %p150 = por %p148, %p149
      %p151 = scmp.ne.s32.totalorder %s143, %s145
      %p152 = scmp.eq.s32.totalorder %s27, 1
      %p153 = por %p151, %p152
      %p154 = scmp.ne.s32.totalorder %s145, %s146
      %p155 = scmp.eq.s32.totalorder %s27, 0
      %p156 = por %p154, %p155
      %p157 = scmp.ne.s32.totalorder %s145, %s146
      %p158 = scmp.eq.s32.totalorder %s28, 1
      %p159 = por %p157, %p158
      %p161 = scmp.ne.s32.totalorder %s146, %s160
      %p162 = scmp.eq.s32.totalorder %s28, 0
      %p163 = por %p161, %p162
      %s165 = sadd.s32 %s164, 1
      %p168 = scmp.eq.s32.totalorder %s22, 1
      %p169 = scmp.ne.s32.totalorder %s164, %s166
      %p170 = scmp.eq.s32.totalorder %s22, 0
      %p171 = por %p169, %p170
      %p172 = scmp.ne.s32.totalorder %s164, %s166
      %p173 = scmp.eq.s32.totalorder %s27, 1
      %p174 = por %p172, %p173
      %p175 = scmp.ne.s32.totalorder %s166, %s167
      %p176 = scmp.eq.s32.totalorder %s27, 0
      %p177 = por %p175, %p176
      %p178 = scmp.ne.s32.totalorder %s166, %s167
      %p179 = scmp.eq.s32.totalorder %s28, 1
      %p180 = por %p178, %p179
      %p182 = scmp.ne.s32.totalorder %s167, %s181
      %p183 = scmp.eq.s32.totalorder %s28, 0
      %p184 = por %p182, %p183
      %s186 = sadd.s32 %s185, 1
      %p189 = scmp.eq.s32.totalorder %s22, 1
      %p190 = scmp.ne.s32.totalorder %s185, %s187
      %p191 = scmp.eq.s32.totalorder %s22, 0
      %p192 = por %p190, %p191
      %p193 = scmp.ne.s32.totalorder %s185, %s187
      %p194 = scmp.eq.s32.totalorder %s27, 1
      %p195 = por %p193, %p194
      %p196 = scmp.ne.s32.totalorder %s187, %s188
      %p197 = scmp.eq.s32.totalorder %s27, 0
      %p198 = por %p196, %p197
      %p199 = scmp.ne.s32.totalorder %s187, %s188
      %p200 = scmp.eq.s32.totalorder %s28, 1
      %p201 = por %p199, %p200
      %p203 = scmp.ne.s32.totalorder %s188, %s202
      %p204 = scmp.eq.s32.totalorder %s28, 0
      %p205 = por %p203, %p204
      %s206 = ssub.s32 %s29, %s41
      %s207 = ssub.s32 %s30, %s37
      %s208 = sor.u32 %s206, %s207
      %p209 = scmp.eq.s32.totalorder %s208, 0
      %s211 = sadd.s32 %s210, 1
      %s212 = scalar_select %p209, %s210, %s211
      %p215 = pneg %p209
      %p216 = scmp.eq.s32.totalorder %s22, 1
      %p217 = por %p215, %p216
      %p218 = scmp.ne.s32.totalorder %s210, %s213
      %p219 = scmp.eq.s32.totalorder %s22, 0
      %p220 = por %p218, %p219
      %p221 = scmp.ne.s32.totalorder %s210, %s213
      %p222 = scmp.eq.s32.totalorder %s27, 1
      %p223 = por %p221, %p222
      %p224 = scmp.ne.s32.totalorder %s213, %s214
      %p225 = scmp.eq.s32.totalorder %s27, 0
      %p226 = por %p224, %p225
      %p227 = scmp.ne.s32.totalorder %s213, %s214
      %p228 = scmp.eq.s32.totalorder %s28, 1
      %p229 = por %p227, %p228
      %p231 = scmp.ne.s32.totalorder %s214, %s230
      %p232 = scmp.eq.s32.totalorder %s28, 0
      %p233 = por %p231, %p232
      %s234 = ssub.s32 %s29, %s41
      %s235 = ssub.s32 %s30, %s37
      %s236 = sor.u32 %s234, %s235
      %p237 = scmp.eq.s32.totalorder %s236, 0
      %s239 = sadd.s32 %s238, 1
      %s240 = scalar_select %p237, %s238, %s239
      %p243 = pneg %p237
      %p244 = scmp.eq.s32.totalorder %s22, 1
      %p245 = por %p243, %p244
      %p246 = scmp.ne.s32.totalorder %s238, %s241
      %p247 = scmp.eq.s32.totalorder %s22, 0
      %p248 = por %p246, %p247
      %p249 = scmp.ne.s32.totalorder %s238, %s241
      %p250 = scmp.eq.s32.totalorder %s27, 1
      %p251 = por %p249, %p250
      %p252 = scmp.ne.s32.totalorder %s241, %s242
      %p253 = scmp.eq.s32.totalorder %s27, 0
      %p254 = por %p252, %p253
      %p255 = scmp.ne.s32.totalorder %s241, %s242
      %p256 = scmp.eq.s32.totalorder %s28, 1
      %p257 = por %p255, %p256
      %p259 = scmp.ne.s32.totalorder %s242, %s258
      %p260 = scmp.eq.s32.totalorder %s28, 0
      %p261 = por %p259, %p260
      %s262 = ssub.s32 %s29, %s41
      %s263 = ssub.s32 %s30, %s37
      %s264 = sor.u32 %s262, %s263
      %p265 = scmp.eq.s32.totalorder %s264, 0
      %s267 = sadd.s32 %s266, 1
      %s268 = scalar_select %p265, %s266, %s267
      %p271 = pneg %p265
      %p272 = scmp.eq.s32.totalorder %s22, 1
      %p273 = por %p271, %p272
      %p274 = scmp.ne.s32.totalorder %s266, %s269
      %p275 = scmp.eq.s32.totalorder %s22, 0
      %p276 = por %p274, %p275
      %p277 = scmp.ne.s32.totalorder %s266, %s269
      %p278 = scmp.eq.s32.totalorder %s27, 1
      %p279 = por %p277, %p278
      %p280 = scmp.ne.s32.totalorder %s269, %s270
      %p281 = scmp.eq.s32.totalorder %s27, 0
      %p282 = por %p280, %p281
      %p283 = scmp.ne.s32.totalorder %s269, %s270
      %p284 = scmp.eq.s32.totalorder %s28, 1
      %p285 = por %p283, %p284
      %p287 = scmp.ne.s32.totalorder %s270, %s286
      %p288 = scmp.eq.s32.totalorder %s28, 0
      %p289 = por %p287, %p288
      %p290 = scmp.le.s32.totalorder 1, %s22
      %p291 = scmp.lt.s32.totalorder %s22, 3
      %p292 = pnand %p290, %p291
      %p293 = pneg %p292
      // Predicated region
      $region9: #{tpu_custom_call.1} parent=5 // pred_check
        _
      $region10: #{tpu_custom_call.1} parent=5 // pred_check_branch
        %295 = sbr.rel (%p292) target = $region12
      $region11: #{tpu_custom_call.1} parent=5 // pred_region
        %s296 = ssub.s32 %s22, 1
        // Predicated region
        $region13: #{tpu_custom_call.1} parent=11 // pred_check
          %p297 = pneg %p135
        $region14: #{tpu_custom_call.1} parent=11 // pred_check_branch
          %299 = sbr.rel (%p297) target = $region16
        $region15: #{tpu_custom_call.1} parent=11 // pred_region
          _
        $region16: #{tpu_custom_call.1} parent=11 // pred_fallthru
          _
        // Predicated region
        $region17: #{tpu_custom_call.1} parent=11 // pred_check
          %p300 = pneg %p156
        $region18: #{tpu_custom_call.1} parent=11 // pred_check_branch
          %302 = sbr.rel (%p300) target = $region20
        $region19: #{tpu_custom_call.1} parent=11 // pred_region
          _
        $region20: #{tpu_custom_call.1} parent=11 // pred_fallthru
          _
        // Predicated region
        $region21: #{tpu_custom_call.1} parent=11 // pred_check
          %p303 = pneg %p177
        $region22: #{tpu_custom_call.1} parent=11 // pred_check_branch
          %305 = sbr.rel (%p303) target = $region24
        $region23: #{tpu_custom_call.1} parent=11 // pred_region
          _
        $region24: #{tpu_custom_call.1} parent=11 // pred_fallthru
          _
        // Predicated region
        $region25: #{tpu_custom_call.1} parent=11 // pred_check
          %p306 = pneg %p198
        $region26: #{tpu_custom_call.1} parent=11 // pred_check_branch
          %308 = sbr.rel (%p306) target = $region28
        $region27: #{tpu_custom_call.1} parent=11 // pred_region
          _
        $region28: #{tpu_custom_call.1} parent=11 // pred_fallthru
          _
      $region12: #{tpu_custom_call.1} parent=5 // pred_fallthru
        _
      %p309 = scmp.lt.s32.totalorder %s22, 2
      // Predicated region
      $region29: #{tpu_custom_call.1} parent=5 // pred_check
        %p310 = pneg %p309
      $region30: #{tpu_custom_call.1} parent=5 // pred_check_branch
        %312 = sbr.rel (%p310) target = $region32
      $region31: #{tpu_custom_call.1} parent=5 // pred_region
        // Predicated region
        $region33: #{tpu_custom_call.1} parent=31 // pred_check
          %p313 = pneg %p56
        $region34: #{tpu_custom_call.1} parent=31 // pred_check_branch
          %315 = sbr.rel (%p313) target = $region36
        $region35: #{tpu_custom_call.1} parent=31 // pred_region
          %p316 = scmp.lt.s32.totalorder %s29, 1
          %s317 = scalar_select %p316, %s29, 1
          %p318 = scmp.lt.s32.totalorder %s30, 0
          %s319 = scalar_select %p318, %s30, 0
          %s320 = smul.addr %s317, 8
          %s321 = sadd.s32 %s319, %s320
          %s322 = smul.addr %s321, 8
          %s323 = scalar_lea.vmem %s0, %s322
        $region36: #{tpu_custom_call.1} parent=31 // pred_fallthru
          _
        // Predicated region
        $region37: #{tpu_custom_call.1} parent=31 // pred_check
          %p324 = pneg %p82
        $region38: #{tpu_custom_call.1} parent=31 // pred_check_branch
          %326 = sbr.rel (%p324) target = $region40
        $region39: #{tpu_custom_call.1} parent=31 // pred_region
          %p327 = scmp.lt.s32.totalorder %s29, 1
          %s328 = scalar_select %p327, %s29, 1
          %s329 = smul.addr %s328, 8
          %s330 = smul.addr %s329, 8
          %s331 = scalar_lea.vmem %s1, %s330
        $region40: #{tpu_custom_call.1} parent=31 // pred_fallthru
          _
        // Predicated region
        $region41: #{tpu_custom_call.1} parent=31 // pred_check
          %p332 = pneg %p108
        $region42: #{tpu_custom_call.1} parent=31 // pred_check_branch
          %334 = sbr.rel (%p332) target = $region44
        $region43: #{tpu_custom_call.1} parent=31 // pred_region
          %p335 = scmp.lt.s32.totalorder %s29, 1
          %s336 = scalar_select %p335, %s29, 1
          %s337 = smul.addr %s336, 8
          %s338 = smul.addr %s337, 8
          %s339 = scalar_lea.vmem %s2, %s338
        $region44: #{tpu_custom_call.1} parent=31 // pred_fallthru
          _
      $region32: #{tpu_custom_call.1} parent=5 // pred_fallthru
        _
      %p340 = scmp.le.s32.totalorder 1, %s22
      %p341 = scmp.lt.s32.totalorder %s22, 3
      %p342 = pnand %p340, %p341
      %p343 = pneg %p342
      // Predicated region
      $region45: #{tpu_custom_call.1} parent=5 // pred_check
        _
      $region46: #{tpu_custom_call.1} parent=5 // pred_check_branch
        %345 = sbr.rel (%p342) target = $region48
      $region47: #{tpu_custom_call.1} parent=5 // pred_region
        %s346 = ssub.s32 %s22, 1
        %p347 = scmp.lt.s32.totalorder %s31, 1
        %s348 = scalar_select %p347, %s31, 1
        %p349 = scmp.lt.s32.totalorder %s32, 0
        %s350 = scalar_select %p349, %s32, 0
        %s351 = smul.addr %s348, 8
        %s352 = sadd.s32 %s350, %s351
        %s353 = smul.addr %s352, 8
        %s354 = scalar_lea.vmem %s0, %s353
        %p355 = pneg %p62
        %p356 = pneg %p59
        %p357 = scmp.lt.s32.totalorder %s31, 1
        %s358 = scalar_select %p357, %s31, 1
        %s359 = smul.addr %s358, 8
        %s360 = smul.addr %s359, 8
        %s361 = scalar_lea.vmem %s1, %s360
        %p362 = pneg %p88
        %p363 = pneg %p85
        %p364 = scmp.lt.s32.totalorder %s31, 1
        %s365 = scalar_select %p364, %s31, 1
        %s366 = smul.addr %s365, 8
        %s367 = smul.addr %s366, 8
        %s368 = scalar_lea.vmem %s2, %s367
        %p369 = pneg %p114
        %p370 = pneg %p111
        %p371 = pneg %p135
        %p372 = pneg %p132
        %p373 = pneg %p156
        %p374 = pneg %p153
        %p375 = pneg %p177
        %p376 = pneg %p174
        %p377 = pneg %p198
        %p378 = pneg %p195
        %p379 = pneg %p226
        %p380 = pneg %p223
        %s381 = sand.u32 %s213, 1
        %s382 = scalar_lea.sflag [#allocation3], %s381
        %s383 = sand.u32 %s213, 1
        %s384 = smul.addr %s383, 64
        %s385 = scalar_lea.vmem [#allocation2], %s384
        %p386 = pneg %p254
        %p387 = pneg %p251
        %s388 = sand.u32 %s27, 1
        %s389 = scalar_lea.sflag [#allocation5], %s388
        %s390 = sand.u32 %s241, 1
        %s391 = smul.addr %s390, 64
        %s392 = scalar_lea.vmem [#allocation4], %s391
        %p393 = pneg %p282
        %p394 = pneg %p279
        %s395 = sand.u32 %s27, 1
        %s396 = scalar_lea.sflag [#allocation5], %s395
        %s397 = sand.u32 %s269, 1
        %s398 = smul.addr %s397, 64
        %s399 = scalar_lea.vmem [#allocation6], %s398
        %p400 = scmp.lt.s32.totalorder %s31, 1
        %s401 = scalar_select %p400, %s31, 1
        %p402 = scmp.lt.s32.totalorder %s32, 0
        %s403 = scalar_select %p402, %s32, 0
        %s404 = smul.addr %s401, 8
        %s405 = sadd.s32 %s403, %s404
        %s406 = smul.addr %s405, 8
        %s407 = scalar_lea.vmem %s0, %s406
        %p408 = scmp.lt.s32.totalorder %s31, 1
        %s409 = scalar_select %p408, %s31, 1
        %s410 = smul.addr %s409, 8
        %s411 = smul.addr %s410, 8
        %s412 = scalar_lea.vmem %s1, %s411
        %p413 = scmp.lt.s32.totalorder %s31, 1
        %s414 = scalar_select %p413, %s31, 1
        %s415 = smul.addr %s414, 8
        %s416 = smul.addr %s415, 8
        %s417 = scalar_lea.vmem %s2, %s416
        %s418 = smul.u32 8, %s32
        %s419 = smul.u32 8, %s32
        %v420 = vld [vmem:[%s407] sm:$0xff]
        %v421 = vld [vmem:[%s407 + $0x8] sm:$0xff]
        %v422 = vld [vmem:[%s407 + $0x10] sm:$0xff]
        %v423 = vld [vmem:[%s407 + $0x18] sm:$0xff]
        %v424 = vld [vmem:[%s407 + $0x20] sm:$0xff]
        %v425 = vld [vmem:[%s407 + $0x28] sm:$0xff]
        %v426 = vld [vmem:[%s407 + $0x30] sm:$0xff]
        %v427 = vld [vmem:[%s407 + $0x38] sm:$0xff]
        %v428 = vld [vmem:[%s412] sm:$0xff]
        %v429 = vld [vmem:[%s412 + $0x8] sm:$0xff]
        %v430 = vld [vmem:[%s412 + $0x10] sm:$0xff]
        %v431 = vld [vmem:[%s412 + $0x18] sm:$0xff]
        %v432 = vld [vmem:[%s412 + $0x20] sm:$0xff]
        %v433 = vld [vmem:[%s412 + $0x28] sm:$0xff]
        %v434 = vld [vmem:[%s412 + $0x30] sm:$0xff]
        %v435 = vld [vmem:[%s412 + $0x38] sm:$0xff]
        %437 = vset.pattern.permute.xlu0 0
        %438 = vperm.xlu0 %437, %v428
        %v439 = vpop.permute.xlu0 %438
        %442 = vset.pattern.permute.xlu0 0
        %443 = vperm.xlu0 %442, %v429
        %v444 = vpop.permute.xlu0 %443
        %447 = vset.pattern.permute.xlu0 0
        %448 = vperm.xlu0 %447, %v430
        %v449 = vpop.permute.xlu0 %448
        %452 = vset.pattern.permute.xlu0 0
        %453 = vperm.xlu0 %452, %v431
        %v454 = vpop.permute.xlu0 %453
        %457 = vset.pattern.permute.xlu0 0
        %458 = vperm.xlu0 %457, %v432
        %v459 = vpop.permute.xlu0 %458
        %462 = vset.pattern.permute.xlu0 0
        %463 = vperm.xlu0 %462, %v433
        %v464 = vpop.permute.xlu0 %463
        %467 = vset.pattern.permute.xlu0 0
        %468 = vperm.xlu0 %467, %v434
        %v469 = vpop.permute.xlu0 %468
        %472 = vset.pattern.permute.xlu0 0
        %473 = vperm.xlu0 %472, %v435
        %v474 = vpop.permute.xlu0 %473
        %v476 = vmul.f32 %v420, %v439
        %v477 = vmul.f32 %v421, %v444
        %v478 = vmul.f32 %v422, %v449
        %v479 = vmul.f32 %v423, %v454
        %v480 = vmul.f32 %v424, %v459
        %v481 = vmul.f32 %v425, %v464
        %v482 = vmul.f32 %v426, %v469
        %v483 = vmul.f32 %v427, %v474
        %v484 = vld [vmem:[%s417] sm:$0xff]
        %v485 = vld [vmem:[%s417 + $0x8] sm:$0xff]
        %v486 = vld [vmem:[%s417 + $0x10] sm:$0xff]
        %v487 = vld [vmem:[%s417 + $0x18] sm:$0xff]
        %v488 = vld [vmem:[%s417 + $0x20] sm:$0xff]
        %v489 = vld [vmem:[%s417 + $0x28] sm:$0xff]
        %v490 = vld [vmem:[%s417 + $0x30] sm:$0xff]
        %v491 = vld [vmem:[%s417 + $0x38] sm:$0xff]
        %493 = vset.pattern.permute.xlu0 0
        %494 = vperm.xlu0 %493, %v484
        %v495 = vpop.permute.xlu0 %494
        %498 = vset.pattern.permute.xlu0 0
        %499 = vperm.xlu0 %498, %v485
        %v500 = vpop.permute.xlu0 %499
        %503 = vset.pattern.permute.xlu0 0
        %504 = vperm.xlu0 %503, %v486
        %v505 = vpop.permute.xlu0 %504
        %508 = vset.pattern.permute.xlu0 0
        %509 = vperm.xlu0 %508, %v487
        %v510 = vpop.permute.xlu0 %509
        %513 = vset.pattern.permute.xlu0 0
        %514 = vperm.xlu0 %513, %v488
        %v515 = vpop.permute.xlu0 %514
        %518 = vset.pattern.permute.xlu0 0
        %519 = vperm.xlu0 %518, %v489
        %v520 = vpop.permute.xlu0 %519
        %523 = vset.pattern.permute.xlu0 0
        %524 = vperm.xlu0 %523, %v490
        %v525 = vpop.permute.xlu0 %524
        %528 = vset.pattern.permute.xlu0 0
        %529 = vperm.xlu0 %528, %v491
        %v530 = vpop.permute.xlu0 %529
        %v532 = vadd.f32 %v476, %v495
        %v533 = vadd.f32 %v477, %v500
        %v534 = vadd.f32 %v478, %v505
        %v535 = vadd.f32 %v479, %v510
        %v536 = vadd.f32 %v480, %v515
        %v537 = vadd.f32 %v481, %v520
        %v538 = vadd.f32 %v482, %v525
        %v539 = vadd.f32 %v483, %v530
        %v540 = vld [vmem:[%s3] sm:$0xff]
        %v541 = vld [vmem:[%s3 + $0x8] sm:$0xff]
        %v542 = vld [vmem:[%s3 + $0x10] sm:$0xff]
        %v543 = vld [vmem:[%s3 + $0x18] sm:$0xff]
        %v544 = vld [vmem:[%s3 + $0x20] sm:$0xff]
        %v545 = vld [vmem:[%s3 + $0x28] sm:$0xff]
        %v546 = vld [vmem:[%s3 + $0x30] sm:$0xff]
        %v547 = vld [vmem:[%s3 + $0x38] sm:$0xff]
        %v548 = vld [vmem:[%s4] sm:$0x1]
        %v550 = vlaneseq
        %v551 = vshrl.u32 %v550, 7
        %v552 = vsub.s32 0, %v551
        %v553 = vrot.slane %v548, %v552
        %555 = vxpose.xlu0.b32.start [1/16] %v532, 128
        %556 = vxpose.xlu0.b32.cont [2/16] %v533, 128
        %557 = vxpose.xlu0.b32.cont [3/16] %v534, 128
        %558 = vxpose.xlu0.b32.cont [4/16] %v535, 128
        %559 = vxpose.xlu0.b32.cont [5/16] %v536, 128
        %560 = vxpose.xlu0.b32.cont [6/16] %v537, 128
        %561 = vxpose.xlu0.b32.cont [7/16] %v538, 128
        %562 = vxpose.xlu0.b32.cont [8/16] %v539, 128
        %563 = vxpose.xlu0.b32.cont [9/16] 0.0, 128
        %564 = vxpose.xlu0.b32.cont [10/16] 0.0, 128
        %565 = vxpose.xlu0.b32.cont [11/16] 0.0, 128
        %566 = vxpose.xlu0.b32.cont [12/16] 0.0, 128
        %567 = vxpose.xlu0.b32.cont [13/16] 0.0, 128
        %568 = vxpose.xlu0.b32.cont [14/16] 0.0, 128
        %569 = vxpose.xlu0.b32.cont [15/16] 0.0, 128
        %570 = vxpose.xlu0.b32.end [16/16] 0.0, 128
        %v571 = vpop.trf.xlu0
        %v572 = vpop.trf.xlu0
        %v573 = vpop.trf.xlu0
        %v574 = vpop.trf.xlu0
        %v575 = vpop.trf.xlu0
        %v576 = vpop.trf.xlu0
        %v577 = vpop.trf.xlu0
        %v578 = vpop.trf.xlu0
        %v579 = vpop.trf.xlu0
        %v580 = vpop.trf.xlu0
        %v581 = vpop.trf.xlu0
        %v582 = vpop.trf.xlu0
        %v583 = vpop.trf.xlu0
        %v584 = vpop.trf.xlu0
        %v585 = vpop.trf.xlu0
        %v586 = vpop.trf.xlu0
        %vm587 = vcmask 523264
        %v589 = vsel %vm587, %v571, 0
        %v592 = vsel %vm587, %v572, 0
        %v595 = vsel %vm587, %v573, 0
        %v598 = vsel %vm587, %v574, 0
        %v601 = vsel %vm587, %v575, 0
        %v604 = vsel %vm587, %v576, 0
        %v607 = vsel %vm587, %v577, 0
        %v610 = vsel %vm587, %v578, 0
        %612 = vmatprep.subr.mxu0 0.0
        %613 = vmatpush1.msra.mxu0 0.0
        %614 = vmatprep.subr.mxu0 0.0
        %615 = vmatpush1.msra.mxu0 0.0
        %616 = vmatprep.subr.mxu0 0.0
        %617 = vmatpush1.msra.mxu0 0.0
        %618 = vmatprep.subr.mxu0 0.0
        %619 = vmatpush1.msra.mxu0 0.0
        %620 = vmatprep.subr.mxu0 0.0
        %621 = vmatpush1.msra.mxu0 0.0
        %622 = vmatprep.subr.mxu0 0.0
        %623 = vmatpush1.msra.mxu0 0.0
        %624 = vmatprep.subr.mxu0 0.0
        %625 = vmatpush1.msra.mxu0 0.0
        %626 = vmatprep.subr.mxu0 0.0
        %627 = vmatpush1.msra.mxu0 0.0
        %628 = vmatprep.subr.mxu0 0.0
        %629 = vmatpush1.msra.mxu0 %v547
        %630 = vmatprep.subr.mxu0 0.0
        %631 = vmatpush1.msra.mxu0 %v546
        %632 = vmatprep.subr.mxu0 0.0
        %633 = vmatpush1.msra.mxu0 %v545
        %634 = vmatprep.subr.mxu0 0.0
        %635 = vmatpush1.msra.mxu0 %v544
        %636 = vmatprep.subr.mxu0 0.0
        %637 = vmatpush1.msra.mxu0 %v543
        %638 = vmatprep.subr.mxu0 0.0
        %639 = vmatpush1.msra.mxu0 %v542
        %640 = vmatprep.subr.mxu0 0.0
        %641 = vmatpush1.msra.mxu0 %v541
        %642 = vmatprep.subr.mxu0 0.0
        %643 = vmatpush1.msra.mxu0 %v540
        %644 = vmatprep.subr.mxu0 0.0
        %645 = vmatpush2.msra.mxu0 0.0
        %646 = vmatprep.subr.mxu0 0.0
        %647 = vmatpush2.msra.mxu0 0.0
        %648 = vmatprep.subr.mxu0 0.0
        %649 = vmatpush2.msra.mxu0 0.0
        %650 = vmatprep.subr.mxu0 0.0
        %651 = vmatpush2.msra.mxu0 0.0
        %652 = vmatprep.subr.mxu0 0.0
        %653 = vmatpush2.msra.mxu0 0.0
        %654 = vmatprep.subr.mxu0 0.0
        %655 = vmatpush2.msra.mxu0 0.0
        %656 = vmatprep.subr.mxu0 0.0
        %657 = vmatpush2.msra.mxu0 0.0
        %658 = vmatprep.subr.mxu0 0.0
        %659 = vmatpush2.msra.mxu0 0.0
        %660 = vmatprep.subr.mxu0 0.0
        %661 = vmatpush2.msra.mxu0 0.0
        %662 = vmatprep.subr.mxu0 0.0
        %663 = vmatpush2.msra.mxu0 0.0
        %664 = vmatprep.subr.mxu0 0.0
        %665 = vmatpush2.msra.mxu0 0.0
        %666 = vmatprep.subr.mxu0 0.0
        %667 = vmatpush2.msra.mxu0 0.0
        %668 = vmatprep.subr.mxu0 0.0
        %669 = vmatpush2.msra.mxu0 0.0
        %670 = vmatprep.subr.mxu0 0.0
        %671 = vmatpush2.msra.mxu0 0.0
        %672 = vmatprep.subr.mxu0 0.0
        %673 = vmatpush2.msra.mxu0 0.0
        %674 = vmatprep.subr.mxu0 0.0
        %675 = vmatpush2.msra.mxu0 0.0
        %676 = vmatprep.mubr.f32.mxu0 0.0
        %677 = vmatmul.mubr.f32.gmra.mxu0 %v589
        %v678 = vpop.f32.mrf.mxu0
        %v679 = vadd.f32 %v553, %v678
        %v680 = vpop.f32.mrf.mxu0
        %681 = vmatprep.mubr.f32.mxu0 0.0
        %682 = vmatmul.mubr.f32.gmra.mxu0 %v592
        %v683 = vpop.f32.mrf.mxu0
        %v684 = vadd.f32 %v553, %v683
        %v685 = vpop.f32.mrf.mxu0
        %686 = vmatprep.mubr.f32.mxu0 0.0
        %687 = vmatmul.mubr.f32.gmra.mxu0 %v595
        %v688 = vpop.f32.mrf.mxu0
        %v689 = vadd.f32 %v553, %v688
        %v690 = vpop.f32.mrf.mxu0
        %691 = vmatprep.mubr.f32.mxu0 0.0
        %692 = vmatmul.mubr.f32.gmra.mxu0 %v598
        %v693 = vpop.f32.mrf.mxu0
        %v694 = vadd.f32 %v553, %v693
        %v695 = vpop.f32.mrf.mxu0
        %696 = vmatprep.mubr.f32.mxu0 0.0
        %697 = vmatmul.mubr.f32.gmra.mxu0 %v601
        %v698 = vpop.f32.mrf.mxu0
        %v699 = vadd.f32 %v553, %v698
        %v700 = vpop.f32.mrf.mxu0
        %701 = vmatprep.mubr.f32.mxu0 0.0
        %702 = vmatmul.mubr.f32.gmra.mxu0 %v604
        %v703 = vpop.f32.mrf.mxu0
        %v704 = vadd.f32 %v553, %v703
        %v705 = vpop.f32.mrf.mxu0
        %706 = vmatprep.mubr.f32.mxu0 0.0
        %707 = vmatmul.mubr.f32.gmra.mxu0 %v607
        %v708 = vpop.f32.mrf.mxu0
        %v709 = vadd.f32 %v553, %v708
        %v710 = vpop.f32.mrf.mxu0
        %711 = vmatprep.mubr.f32.mxu0 0.0
        %712 = vmatmul.mubr.f32.gmra.mxu0 %v610
        %v713 = vpop.f32.mrf.mxu0
        %v714 = vadd.f32 %v553, %v713
        %v715 = vpop.f32.mrf.mxu0
        %716 = vdwg.mxu0
        %v717 = vld [vmem:[%s5] sm:$0xff]
        %v718 = vld [vmem:[%s5 + $0x8] sm:$0xff]
        %v719 = vld [vmem:[%s5 + $0x10] sm:$0xff]
        %v720 = vld [vmem:[%s5 + $0x18] sm:$0xff]
        %v721 = vld [vmem:[%s5 + $0x20] sm:$0xff]
        %v722 = vld [vmem:[%s5 + $0x28] sm:$0xff]
        %v723 = vld [vmem:[%s5 + $0x30] sm:$0xff]
        %v724 = vld [vmem:[%s5 + $0x38] sm:$0xff]
        %v725 = vld [vmem:[%s6] sm:$0xff]
        %v726 = vld [vmem:[%s6 + $0x8] sm:$0xff]
        %v727 = vld [vmem:[%s6 + $0x10] sm:$0xff]
        %v728 = vld [vmem:[%s6 + $0x18] sm:$0xff]
        %v729 = vld [vmem:[%s6 + $0x20] sm:$0xff]
        %v730 = vld [vmem:[%s6 + $0x28] sm:$0xff]
        %v731 = vld [vmem:[%s6 + $0x30] sm:$0xff]
        %v732 = vld [vmem:[%s6 + $0x38] sm:$0xff]
        %734 = vset.pattern.permute.xlu0 0
        %735 = vperm.xlu0 %734, %v725
        %v736 = vpop.permute.xlu0 %735
        %739 = vset.pattern.permute.xlu0 0
        %740 = vperm.xlu0 %739, %v726
        %v741 = vpop.permute.xlu0 %740
        %744 = vset.pattern.permute.xlu0 0
        %745 = vperm.xlu0 %744, %v727
        %v746 = vpop.permute.xlu0 %745
        %749 = vset.pattern.permute.xlu0 0
        %750 = vperm.xlu0 %749, %v728
        %v751 = vpop.permute.xlu0 %750
        %754 = vset.pattern.permute.xlu0 0
        %755 = vperm.xlu0 %754, %v729
        %v756 = vpop.permute.xlu0 %755
        %759 = vset.pattern.permute.xlu0 0
        %760 = vperm.xlu0 %759, %v730
        %v761 = vpop.permute.xlu0 %760
        %764 = vset.pattern.permute.xlu0 0
        %765 = vperm.xlu0 %764, %v731
        %v766 = vpop.permute.xlu0 %765
        %769 = vset.pattern.permute.xlu0 0
        %770 = vperm.xlu0 %769, %v732
        %v771 = vpop.permute.xlu0 %770
        %v774 = vsel %vm587, %v717, 0
        %v777 = vsel %vm587, %v718, 0
        %v780 = vsel %vm587, %v719, 0
        %v783 = vsel %vm587, %v720, 0
        %v786 = vsel %vm587, %v721, 0
        %v789 = vsel %vm587, %v722, 0
        %v792 = vsel %vm587, %v723, 0
        %v795 = vsel %vm587, %v724, 0
        %797 = vmatprep.subr.mxu0 0.0
        %798 = vmatpush1.msra.mxu0 0.0
        %799 = vmatprep.subr.mxu0 0.0
        %800 = vmatpush1.msra.mxu0 0.0
        %801 = vmatprep.subr.mxu0 0.0
        %802 = vmatpush1.msra.mxu0 0.0
        %803 = vmatprep.subr.mxu0 0.0
        %804 = vmatpush1.msra.mxu0 0.0
        %805 = vmatprep.subr.mxu0 0.0
        %806 = vmatpush1.msra.mxu0 0.0
        %807 = vmatprep.subr.mxu0 0.0
        %808 = vmatpush1.msra.mxu0 0.0
        %809 = vmatprep.subr.mxu0 0.0
        %810 = vmatpush1.msra.mxu0 0.0
        %811 = vmatprep.subr.mxu0 0.0
        %812 = vmatpush1.msra.mxu0 0.0
        %813 = vmatprep.subr.mxu0 0.0
        %814 = vmatpush1.msra.mxu0 %v539
        %815 = vmatprep.subr.mxu0 0.0
        %816 = vmatpush1.msra.mxu0 %v538
        %817 = vmatprep.subr.mxu0 0.0
        %818 = vmatpush1.msra.mxu0 %v537
        %819 = vmatprep.subr.mxu0 0.0
        %820 = vmatpush1.msra.mxu0 %v536
        %821 = vmatprep.subr.mxu0 0.0
        %822 = vmatpush1.msra.mxu0 %v535
        %823 = vmatprep.subr.mxu0 0.0
        %824 = vmatpush1.msra.mxu0 %v534
        %825 = vmatprep.subr.mxu0 0.0
        %826 = vmatpush1.msra.mxu0 %v533
        %827 = vmatprep.subr.mxu0 0.0
        %828 = vmatpush1.msra.mxu0 %v532
        %829 = vmatprep.subr.mxu0 0.0
        %830 = vmatpush2.msra.mxu0 0.0
        %831 = vmatprep.subr.mxu0 0.0
        %832 = vmatpush2.msra.mxu0 0.0
        %833 = vmatprep.subr.mxu0 0.0
        %834 = vmatpush2.msra.mxu0 0.0
        %835 = vmatprep.subr.mxu0 0.0
        %836 = vmatpush2.msra.mxu0 0.0
        %837 = vmatprep.subr.mxu0 0.0
        %838 = vmatpush2.msra.mxu0 0.0
        %839 = vmatprep.subr.mxu0 0.0
        %840 = vmatpush2.msra.mxu0 0.0
        %841 = vmatprep.subr.mxu0 0.0
        %842 = vmatpush2.msra.mxu0 0.0
        %843 = vmatprep.subr.mxu0 0.0
        %844 = vmatpush2.msra.mxu0 0.0
        %845 = vmatprep.subr.mxu0 0.0
        %846 = vmatpush2.msra.mxu0 0.0
        %847 = vmatprep.subr.mxu0 0.0
        %848 = vmatpush2.msra.mxu0 0.0
        %849 = vmatprep.subr.mxu0 0.0
        %850 = vmatpush2.msra.mxu0 0.0
        %851 = vmatprep.subr.mxu0 0.0
        %852 = vmatpush2.msra.mxu0 0.0
        %853 = vmatprep.subr.mxu0 0.0
        %854 = vmatpush2.msra.mxu0 0.0
        %855 = vmatprep.subr.mxu0 0.0
        %856 = vmatpush2.msra.mxu0 0.0
        %857 = vmatprep.subr.mxu0 0.0
        %858 = vmatpush2.msra.mxu0 0.0
        %859 = vmatprep.subr.mxu0 0.0
        %860 = vmatpush2.msra.mxu0 0.0
        %861 = vmatprep.mubr.f32.mxu0 0.0
        %862 = vmatmul.mubr.f32.gmra.mxu0 %v774
        %v863 = vpop.f32.mrf.mxu0
        %v864 = vadd.f32 %v736, %v863
        %v865 = vpop.f32.mrf.mxu0
        %866 = vmatprep.mubr.f32.mxu0 0.0
        %867 = vmatmul.mubr.f32.gmra.mxu0 %v777
        %v868 = vpop.f32.mrf.mxu0
        %v869 = vadd.f32 %v741, %v868
        %v870 = vpop.f32.mrf.mxu0
        %871 = vmatprep.mubr.f32.mxu0 0.0
        %872 = vmatmul.mubr.f32.gmra.mxu0 %v780
        %v873 = vpop.f32.mrf.mxu0
        %v874 = vadd.f32 %v746, %v873
        %v875 = vpop.f32.mrf.mxu0
        %876 = vmatprep.mubr.f32.mxu0 0.0
        %877 = vmatmul.mubr.f32.gmra.mxu0 %v783
        %v878 = vpop.f32.mrf.mxu0
        %v879 = vadd.f32 %v751, %v878
        %v880 = vpop.f32.mrf.mxu0
        %881 = vmatprep.mubr.f32.mxu0 0.0
        %882 = vmatmul.mubr.f32.gmra.mxu0 %v786
        %v883 = vpop.f32.mrf.mxu0
        %v884 = vadd.f32 %v756, %v883
        %v885 = vpop.f32.mrf.mxu0
        %886 = vmatprep.mubr.f32.mxu0 0.0
        %887 = vmatmul.mubr.f32.gmra.mxu0 %v789
        %v888 = vpop.f32.mrf.mxu0
        %v889 = vadd.f32 %v761, %v888
        %v890 = vpop.f32.mrf.mxu0
        %891 = vmatprep.mubr.f32.mxu0 0.0
        %892 = vmatmul.mubr.f32.gmra.mxu0 %v792
        %v893 = vpop.f32.mrf.mxu0
        %v894 = vadd.f32 %v766, %v893
        %v895 = vpop.f32.mrf.mxu0
        %896 = vmatprep.mubr.f32.mxu0 0.0
        %897 = vmatmul.mubr.f32.gmra.mxu0 %v795
        %v898 = vpop.f32.mrf.mxu0
        %v899 = vadd.f32 %v771, %v898
        %v900 = vpop.f32.mrf.mxu0
        %901 = vdwg.mxu0
        %902 = vst.msk [vmem:[%s385] sm:$0xff] %vm587, %v679
        %903 = vst.msk [vmem:[%s385 + $0x8] sm:$0xff] %vm587, %v684
        %904 = vst.msk [vmem:[%s385 + $0x10] sm:$0xff] %vm587, %v689
        %905 = vst.msk [vmem:[%s385 + $0x18] sm:$0xff] %vm587, %v694
        %906 = vst.msk [vmem:[%s385 + $0x20] sm:$0xff] %vm587, %v699
        %907 = vst.msk [vmem:[%s385 + $0x28] sm:$0xff] %vm587, %v704
        %908 = vst.msk [vmem:[%s385 + $0x30] sm:$0xff] %vm587, %v709
        %909 = vst.msk [vmem:[%s385 + $0x38] sm:$0xff] %vm587, %v714
        %918 = vrot.lane.b32.xlu0 %v679, 64
        %v919 = vpop.permute.xlu0 %918
        %920 = vrot.lane.b32.xlu0 %v684, 64
        %v921 = vpop.permute.xlu0 %920
        %922 = vrot.lane.b32.xlu0 %v689, 64
        %v923 = vpop.permute.xlu0 %922
        %924 = vrot.lane.b32.xlu0 %v694, 64
        %v925 = vpop.permute.xlu0 %924
        %926 = vrot.lane.b32.xlu0 %v699, 64
        %v927 = vpop.permute.xlu0 %926
        %928 = vrot.lane.b32.xlu0 %v704, 64
        %v929 = vpop.permute.xlu0 %928
        %930 = vrot.lane.b32.xlu0 %v709, 64
        %v931 = vpop.permute.xlu0 %930
        %932 = vrot.lane.b32.xlu0 %v714, 64
        %v933 = vpop.permute.xlu0 %932
        %942 = vst.msk [vmem:[%s392] sm:$0xff] %vm587, %v919
        %943 = vst.msk [vmem:[%s392 + $0x8] sm:$0xff] %vm587, %v921
        %944 = vst.msk [vmem:[%s392 + $0x10] sm:$0xff] %vm587, %v923
        %945 = vst.msk [vmem:[%s392 + $0x18] sm:$0xff] %vm587, %v925
        %946 = vst.msk [vmem:[%s392 + $0x20] sm:$0xff] %vm587, %v927
        %947 = vst.msk [vmem:[%s392 + $0x28] sm:$0xff] %vm587, %v929
        %948 = vst.msk [vmem:[%s392 + $0x30] sm:$0xff] %vm587, %v931
        %949 = vst.msk [vmem:[%s392 + $0x38] sm:$0xff] %vm587, %v933
        %950 = vst.msk [vmem:[%s399] sm:$0xff] %vm587, %v864
        %951 = vst.msk [vmem:[%s399 + $0x8] sm:$0xff] %vm587, %v869
        %952 = vst.msk [vmem:[%s399 + $0x10] sm:$0xff] %vm587, %v874
        %953 = vst.msk [vmem:[%s399 + $0x18] sm:$0xff] %vm587, %v879
        %954 = vst.msk [vmem:[%s399 + $0x20] sm:$0xff] %vm587, %v884
        %955 = vst.msk [vmem:[%s399 + $0x28] sm:$0xff] %vm587, %v889
        %956 = vst.msk [vmem:[%s399 + $0x30] sm:$0xff] %vm587, %v894
        %957 = vst.msk [vmem:[%s399 + $0x38] sm:$0xff] %vm587, %v899
        %s958 = sand.u32 %s213, 1
        %s959 = scalar_lea.sflag [#allocation3], %s958
        %s960 = sand.u32 %s213, 1
        %s961 = smul.addr %s960, 64
        %s962 = scalar_lea.vmem [#allocation2], %s961
        %s963 = sand.u32 %s27, 1
        %s964 = scalar_lea.sflag [#allocation5], %s963
        %s965 = sand.u32 %s241, 1
        %s966 = smul.addr %s965, 64
        %s967 = scalar_lea.vmem [#allocation4], %s966
        %s968 = sand.u32 %s27, 1
        %s969 = scalar_lea.sflag [#allocation5], %s968
        %s970 = sand.u32 %s269, 1
        %s971 = smul.addr %s970, 64
        %s972 = scalar_lea.vmem [#allocation6], %s971
        // Predicated region
        $region49: #{tpu_custom_call.1} parent=47 // pred_check
          %p973 = pneg %p223
        $region50: #{tpu_custom_call.1} parent=47 // pred_check_branch
          %975 = sbr.rel (%p973) target = $region52
        $region51: #{tpu_custom_call.1} parent=47 // pred_region
          %s976 = smul.u32 8, %s32
          %s978 = ssub.s32 1024, 1024
          %979 = vsyncadd %s959, %s978
          %s980 = smul.addr %s31, 8
          %s981 = sadd.s32 %s976, %s980
          %s982 = smul.addr %s981, 128
          %s983 = scalar_lea.hbm %s7, %s982
          %s984 = sshll.u32 %s962, 4
          %s985 = int_to_ptr.vmem [resolvable:$true] %s984
          %990 = dma.vmem_to_hbm [thread:$0]  %s985, 1024, %s983, %s959, 128, 128, 8
        $region52: #{tpu_custom_call.1} parent=47 // pred_fallthru
          _
        // Predicated region
        $region53: #{tpu_custom_call.1} parent=47 // pred_check
          %p991 = pneg %p251
        $region54: #{tpu_custom_call.1} parent=47 // pred_check_branch
          %993 = sbr.rel (%p991) target = $region56
        $region55: #{tpu_custom_call.1} parent=47 // pred_region
          %s994 = smul.u32 8, %s32
          %s996 = ssub.s32 1024, 1024
          %997 = vsyncadd %s964, %s996
          %s998 = smul.addr %s31, 8
          %s999 = sadd.s32 %s994, %s998
          %s1000 = smul.addr %s999, 128
          %s1001 = scalar_lea.hbm %s8, %s1000
          %s1002 = sshll.u32 %s967, 4
          %s1003 = int_to_ptr.vmem [resolvable:$true] %s1002
          %1008 = dma.vmem_to_hbm [thread:$0]  %s1003, 1024, %s1001, %s964, 128, 128, 8
        $region56: #{tpu_custom_call.1} parent=47 // pred_fallthru
          _
        // Predicated region
        $region57: #{tpu_custom_call.1} parent=47 // pred_check
          %p1009 = pneg %p279
        $region58: #{tpu_custom_call.1} parent=47 // pred_check_branch
          %1011 = sbr.rel (%p1009) target = $region60
        $region59: #{tpu_custom_call.1} parent=47 // pred_region
          %s1013 = ssub.s32 1024, 1024
          %1014 = vsyncadd %s969, %s1013
          %s1015 = smul.addr %s31, 8
          %s1016 = sadd.s32 %s32, %s1015
          %s1017 = smul.addr %s1016, 128
          %s1018 = scalar_lea.hbm %s9, %s1017
          %s1019 = sshll.u32 %s972, 4
          %s1020 = int_to_ptr.vmem [resolvable:$true] %s1019
          %1025 = dma.vmem_to_hbm [thread:$0]  %s1020, 1024, %s1018, %s969, 128, 128, 8
        $region60: #{tpu_custom_call.1} parent=47 // pred_fallthru
          _
      $region48: #{tpu_custom_call.1} parent=5 // pred_fallthru
        _
      %p1026 = scmp.le.s32.totalorder 2, %s22
      // Predicated region
      $region61: #{tpu_custom_call.1} parent=5 // pred_check
        %p1027 = pneg %p1026
      $region62: #{tpu_custom_call.1} parent=5 // pred_check_branch
        %1029 = sbr.rel (%p1027) target = $region64
      $region63: #{tpu_custom_call.1} parent=5 // pred_region
        %s1030 = ssub.s32 %s22, 2
        // Predicated region
        $region65: #{tpu_custom_call.1} parent=63 // pred_check
          %p1031 = pneg %p229
        $region66: #{tpu_custom_call.1} parent=63 // pred_check_branch
          %1033 = sbr.rel (%p1031) target = $region68
        $region67: #{tpu_custom_call.1} parent=63 // pred_region
          %s1034 = sand.u32 %s214, 1
          %s1035 = scalar_lea.sflag [#allocation3], %s1034
          %s1036 = sand.u32 %s214, 1
          %s1037 = smul.addr %s1036, 64
          %s1038 = scalar_lea.vmem [#allocation2], %s1037
          %1039 = dma.done %s1035, 1024
        $region68: #{tpu_custom_call.1} parent=63 // pred_fallthru
          _
        // Predicated region
        $region69: #{tpu_custom_call.1} parent=63 // pred_check
          %p1040 = pneg %p257
        $region70: #{tpu_custom_call.1} parent=63 // pred_check_branch
          %1042 = sbr.rel (%p1040) target = $region72
        $region71: #{tpu_custom_call.1} parent=63 // pred_region
          %s1043 = sand.u32 %s28, 1
          %s1044 = scalar_lea.sflag [#allocation5], %s1043
          %s1045 = sand.u32 %s242, 1
          %s1046 = smul.addr %s1045, 64
          %s1047 = scalar_lea.vmem [#allocation4], %s1046
          %1048 = dma.done %s1044, 1024
        $region72: #{tpu_custom_call.1} parent=63 // pred_fallthru
          _
        // Predicated region
        $region73: #{tpu_custom_call.1} parent=63 // pred_check
          %p1049 = pneg %p285
        $region74: #{tpu_custom_call.1} parent=63 // pred_check_branch
          %1051 = sbr.rel (%p1049) target = $region76
        $region75: #{tpu_custom_call.1} parent=63 // pred_region
          %s1052 = sand.u32 %s28, 1
          %s1053 = scalar_lea.sflag [#allocation5], %s1052
          %s1054 = sand.u32 %s270, 1
          %s1055 = smul.addr %s1054, 64
          %s1056 = scalar_lea.vmem [#allocation6], %s1055
          %1057 = dma.done %s1053, 1024
        $region76: #{tpu_custom_call.1} parent=63 // pred_fallthru
          _
      $region64: #{tpu_custom_call.1} parent=5 // pred_fallthru
        _
    $region6: #{tpu_custom_call.1} parent=1 // loop_footer
      %s26 = sadd.s32 1, %s22
    $region7: #{tpu_custom_call.1} parent=1 // loop_footer_branch
      %21 = sbr.rel target = $region3
    $region8: #{tpu_custom_call.1} parent=1 // loop_exit
      _
    %1058 = vsyncpa [#allocation3], 1
    %s1059 = scalar_lea.sflag [#allocation3], 1
    %1060 = vsyncpa %s1059, 1
    %1061 = vsyncpa [#allocation5], 1
    %s1062 = scalar_lea.sflag [#allocation5], 1
    %1063 = vsyncpa %s1062, 1

</llo_original>
